<compile_context>
chip_gen: v7x
topology: tpu7x:2x2x1
jax: 0.10.0
libtpu: 0.0.40
codegen_flags: <defaults>
</compile_context>

<pallas_src>
import math
import jax
import jax.numpy as jnp
from jax.experimental import pallas as pl
from jax.experimental.pallas import tpu as pltpu


# --------------------------------------------------------------------------------------
# helpers
# --------------------------------------------------------------------------------------
def _round_up(x, m):
    return ((x + m - 1) // m) * m


def _cdiv(a, b):
    return (a + b - 1) // b


def _tpu_generation():
    """Best-effort TPU generation (5/6/7); 0 if unknown. Only used for tile caps."""
    try:
        kind = jax.devices()[0].device_kind.lower()
    except Exception:
        return 0
    for g in (7, 6, 5):
        if f"v{g}" in kind:
            return g
    return 0


# --------------------------------------------------------------------------------------
# kernel
# --------------------------------------------------------------------------------------
def _linear_kernel(x_ref, w_ref, b_ref, o_ref, acc_ref):
    # x_ref: (tb, tk)   w_ref: (tk, tn)   b_ref: (1, tn) f32
    # o_ref: (tb, tn)   acc_ref: (tb, tn) f32 scratch
    k = pl.program_id(2)

    @pl.when(k == 0)
    def _():
        # Seed the accumulator with the bias -> no extra add on the final step.
        acc_ref[...] = jnp.broadcast_to(b_ref[...].astype(jnp.float32), acc_ref.shape)

    # Plain NN matmul on the MXU (weight already pre-transposed to (D, C) layout).
    acc_ref[...] += jnp.dot(x_ref[...], w_ref[...], preferred_element_type=jnp.float32)

    @pl.when(k == pl.num_programs(2) - 1)
    def _():
        o_ref[...] = acc_ref[...].astype(o_ref.dtype)


# --------------------------------------------------------------------------------------
# planning / parameter prep / apply
# --------------------------------------------------------------------------------------
def make_plan(B, C, D, x_dtype, w_dtype, out_dtype=jnp.float32):
    """Choose tiles, padded extents and a VMEM limit for the given problem."""
    gen = _tpu_generation()
    x_isz = jnp.dtype(x_dtype).itemsize
    w_isz = jnp.dtype(w_dtype).itemsize
    o_isz = jnp.dtype(out_dtype).itemsize

    # Batch tile sublane multiple depends on the activation dtype.
    sub = max(8, 32 // x_isz)

    if gen in (5, 6):           # 128 MiB VMEM -> bigger tiles, higher limit
        tb_cap, tn_cap, vmem_cap = 512, 512, 100 * 1024 * 1024
    else:                       # v7x (64 MiB/TC) or unknown -> conservative
        tb_cap, tn_cap, vmem_cap = 256, 256, 48 * 1024 * 1024
    tk_cap = 1024

    Cp0 = _round_up(C, 128)     # output / bias lane dim
    Dp0 = _round_up(D, 128)     # contraction lane dim (zero-pad is exact)

    tb = min(_round_up(B, sub), tb_cap)
    tn = min(Cp0, tn_cap)
    tk = min(Dp0, tk_cap)

    # Make sure there are >= 2 parallel output blocks when the problem allows it
    # (keeps both v7x TensorCores busy; measured near-neutral on v5e/v6e).
    if _cdiv(B, tb) * _cdiv(Cp0, tn) < 2:
        if Cp0 >= 256:
            tn = max(128, _round_up(Cp0 // 2, 128))
        elif B > sub:
            tb = _round_up(_cdiv(B, 2), sub)

    def need(tb_, tn_, tk_):
        return (2 * (tb_ * tk_ * x_isz + tk_ * tn_ * w_isz + tn_ * 4)  # dbl-buffered inputs (bias f32)
                + 2 * tb_ * tn_ * o_isz                                # dbl-buffered output
                + tb_ * tn_ * 4)                                       # f32 accumulator scratch

    # Shrink the reduction tile (then the class tile) until we fit with 2x headroom.
    while 2 * need(tb, tn, tk) > vmem_cap and tk > 128:
        tk = max(128, _round_up(tk // 2, 128))
    while 2 * need(tb, tn, tk) > vmem_cap and tn > 128:
        tn = max(128, _round_up(tn // 2, 128))

    Bp = _round_up(B, tb)
    Cp = _round_up(Cp0, tn)
    Dp = _round_up(Dp0, tk)

    vmem_limit = int(min(max(2 * need(tb, tn, tk), 16 * 1024 * 1024), vmem_cap))

    return dict(B=B, C=C, D=D, tb=tb, tn=tn, tk=tk, Bp=Bp, Cp=Cp, Dp=Dp,
                vmem_limit=vmem_limit, out_dtype=jnp.dtype(out_dtype))


def prepare_classifier_params(weight, bias, plan, *, param_dtype=None):
    """One-time (off the hot path): transpose + zero-pad weight to (Dp, Cp), bias -> f32 (1, Cp)."""
    C, D = weight.shape
    Dp, Cp = plan["Dp"], plan["Cp"]

    w = weight if param_dtype is None else weight.astype(param_dtype)
    w_t = jnp.transpose(w)                                   # (D, C)
    if (Dp, Cp) != (D, C):
        w_t = jnp.pad(w_t, ((0, Dp - D), (0, Cp - C)))

    b = bias.astype(jnp.float32)                              # keep bias in f32
    if Cp != C:
        b = jnp.pad(b, (0, Cp - C))
    return w_t, b.reshape(1, Cp)


def linear_classifier_apply(seq_rep, w_t, bias_row, plan, *, slice_output=True):
    """seq_rep: (B, D); w_t: (Dp, Cp) prepared weight; bias_row: (1, Cp) f32."""
    B, D = seq_rep.shape
    assert (B, D) == (plan["B"], plan["D"])
    Bp, Cp, Dp = plan["Bp"], plan["Cp"], plan["Dp"]
    tb, tn, tk = plan["tb"], plan["tn"], plan["tk"]

    x_p = seq_rep
    if (Bp, Dp) != (B, D):
        x_p = jnp.pad(seq_rep, ((0, Bp - B), (0, Dp - D)))

    grid = (Bp // tb, Cp // tn, Dp // tk)

    out_p = pl.pallas_call(
        _linear_kernel,
        out_shape=jax.ShapeDtypeStruct((Bp, Cp), plan["out_dtype"]),
        grid_spec=pltpu.PrefetchScalarGridSpec(
            num_scalar_prefetch=0,
            grid=grid,
            in_specs=[
                pl.BlockSpec((tb, tk), lambda i, j, k: (i, k)),   # activations
                pl.BlockSpec((tk, tn), lambda i, j, k: (k, j)),   # pre-transposed weight
                pl.BlockSpec((1, tn), lambda i, j, k: (0, j)),    # bias (f32)
            ],
            out_specs=pl.BlockSpec((tb, tn), lambda i, j, k: (i, j)),
            scratch_shapes=[pltpu.VMEM((tb, tn), jnp.float32)],
        ),
        compiler_params=pltpu.CompilerParams(
            dimension_semantics=("parallel", "parallel", "arbitrary"),
            vmem_limit_bytes=plan["vmem_limit"],
        ),
    )(x_p, w_t, bias_row)

    # Skip the extra HBM pass when the logits are already the exact shape.
    if slice_output and (Bp, Cp) != (plan["B"], plan["C"]):
        return out_p[: plan["B"], : plan["C"]]
    return out_p


def linear_classifier(seq_rep, weight, bias, *, out_dtype=jnp.float32):
    """Convenience one-shot wrapper (plan + prep + apply)."""
    B, D = seq_rep.shape
    C, D_w = weight.shape
    assert D_w == D and bias.shape == (C,)
    plan = make_plan(B, C, D, seq_rep.dtype, weight.dtype, out_dtype)
    w_t, b_row = prepare_classifier_params(weight, bias, plan)
    return linear_classifier_apply(seq_rep, w_t, b_row, plan)


# --------------------------------------------------------------------------------------
# demo / correctness check
# --------------------------------------------------------------------------------------
if __name__ == "__main__":
    # Small, module-consistent shapes: batch=8 sequence reps of embed_dim=32 -> 16 classes.
    B, embed_dim, n_classes = 8, 32, 16

    key = jax.random.PRNGKey(0)
    kx, kw, kb = jax.random.split(key, 3)

    # nn.Linear default init: U(-1/sqrt(fan_in), 1/sqrt(fan_in)) for weight and bias.
    bound = 1.0 / math.sqrt(embed_dim)
    weight = jax.random.uniform(kw, (n_classes, embed_dim), jnp.float32,
                                minval=-bound, maxval=bound)
    bias = jax.random.uniform(kb, (n_classes,), jnp.float32,
                              minval=-bound, maxval=bound)
    seq_rep = jax.random.normal(kx, (B, embed_dim), jnp.float32)

    # --- f32 path -------------------------------------------------------------------
    out = jax.block_until_ready(linear_classifier(seq_rep, weight, bias))
    ref = seq_rep @ weight.T + bias
    assert out.shape == (B, n_classes)
    assert jnp.allclose(out, ref, atol=1e-5, rtol=1e-5)

    # --- bf16 inputs, f32 logits (recommended weight-bandwidth-bound configuration) --
    out_bf = jax.block_until_ready(
        linear_classifier(seq_rep.astype(jnp.bfloat16), weight.astype(jnp.bfloat16),
                          bias, out_dtype=jnp.float32))
    ref_bf = (seq_rep.astype(jnp.bfloat16).astype(jnp.float32)
              @ weight.astype(jnp.bfloat16).astype(jnp.float32).T + bias)
    assert out_bf.shape == (B, n_classes)
    assert jnp.allclose(out_bf, ref_bf, atol=5e-2, rtol=5e-2)

    print("KERNEL_OK")
</pallas_src>

<mosaic_0001>
module attributes {stable_mosaic.version = 11 : i64} {
  func.func @_linear_kernel(%arg0: i32, %arg1: i32, %arg2: i32, %arg3: memref<8x128xf32, #tpu.memory_space<vmem>>, %arg4: memref<128x128xf32, #tpu.memory_space<vmem>>, %arg5: memref<1x128xf32, #tpu.memory_space<vmem>>, %arg6: memref<8x128xf32, #tpu.memory_space<vmem>>, %arg7: memref<8x128xf32, #tpu.memory_space<vmem>>) attributes {dimension_semantics = [#tpu.dimension_semantics<parallel>, #tpu.dimension_semantics<parallel>, #tpu.dimension_semantics<arbitrary>], iteration_bounds = array<i64: 1, 1, 1>, scalar_prefetch = 0 : i64, scratch_operands = 1 : i64, tpu.core_type = #tpu.core_type<tc>, window_params = [{transform_indices = @transform_0, window_bounds = array<i64: 8, 128>}, {transform_indices = @transform_1, window_bounds = array<i64: 128, 128>}, {transform_indices = @transform_2, window_bounds = array<i64: 1, 128>}, {transform_indices = @transform_3, window_bounds = array<i64: 8, 128>}]} {
    %c0_i32 = arith.constant 0 : i32
    %0 = arith.cmpi eq, %arg2, %c0_i32 : i32
    %1 = arith.extui %0 : i1 to i32
    %c0_i32_0 = arith.constant 0 : i32
    %2 = arith.cmpi ne, %1, %c0_i32_0 : i32
    scf.if %2 {
      %c0_10 = arith.constant 0 : index
      %c0_11 = arith.constant 0 : index
      %12 = vector.load %arg5[%c0_10, %c0_11] : memref<1x128xf32, #tpu.memory_space<vmem>>, vector<1x128xf32>
      %13 = vector.shape_cast %12 : vector<1x128xf32> to vector<1x128xf32>
      %14 = vector.broadcast %13 : vector<1x128xf32> to vector<8x128xf32>
      %c0_12 = arith.constant 0 : index
      %c0_13 = arith.constant 0 : index
      %15 = vector.load %arg7[%c0_12, %c0_13] : memref<8x128xf32, #tpu.memory_space<vmem>>, vector<8x128xf32>
      tpu.vector_store %arg7[%c0_12, %c0_13], %14 {strides = array<i32>} : memref<8x128xf32, #tpu.memory_space<vmem>>, vector<8x128xf32>,
    } else {
    }
    %c0 = arith.constant 0 : index
    %c0_1 = arith.constant 0 : index
    %3 = vector.load %arg7[%c0, %c0_1] : memref<8x128xf32, #tpu.memory_space<vmem>>, vector<8x128xf32>
    %c0_2 = arith.constant 0 : index
    %c0_3 = arith.constant 0 : index
    %4 = vector.load %arg3[%c0_2, %c0_3] : memref<8x128xf32, #tpu.memory_space<vmem>>, vector<8x128xf32>
    %c0_4 = arith.constant 0 : index
    %c0_5 = arith.constant 0 : index
    %5 = vector.load %arg4[%c0_4, %c0_5] : memref<128x128xf32, #tpu.memory_space<vmem>>, vector<128x128xf32>
    %cst = arith.constant dense<0.000000e+00> : vector<8x128xf32>
    %6 = tpu.matmul %4, %5, %cst {dimension_numbers = #tpu.dot_dimension_numbers<[1], [0], [0], [1], [0, 0, 1, 1], [], []>} : vector<8x128xf32>, vector<128x128xf32>, vector<8x128xf32> -> vector<8x128xf32>
    %7 = arith.addf %3, %6 : vector<8x128xf32>
    %c0_6 = arith.constant 0 : index
    %c0_7 = arith.constant 0 : index
    %8 = vector.load %arg7[%c0_6, %c0_7] : memref<8x128xf32, #tpu.memory_space<vmem>>, vector<8x128xf32>
    tpu.vector_store %arg7[%c0_6, %c0_7], %7 {strides = array<i32>} : memref<8x128xf32, #tpu.memory_space<vmem>>, vector<8x128xf32>,
    %c0_i32_8 = arith.constant 0 : i32
    %9 = arith.cmpi eq, %arg2, %c0_i32_8 : i32
    %10 = arith.extui %9 : i1 to i32
    %c0_i32_9 = arith.constant 0 : i32
    %11 = arith.cmpi ne, %10, %c0_i32_9 : i32
    scf.if %11 {
      %c0_10 = arith.constant 0 : index
      %c0_11 = arith.constant 0 : index
      %12 = vector.load %arg7[%c0_10, %c0_11] : memref<8x128xf32, #tpu.memory_space<vmem>>, vector<8x128xf32>
      %c0_12 = arith.constant 0 : index
      %c0_13 = arith.constant 0 : index
      %13 = vector.load %arg6[%c0_12, %c0_13] : memref<8x128xf32, #tpu.memory_space<vmem>>, vector<8x128xf32>
      tpu.vector_store %arg6[%c0_12, %c0_13], %12 {strides = array<i32>} : memref<8x128xf32, #tpu.memory_space<vmem>>, vector<8x128xf32>,
    } else {
    }
    return
  }
  func.func @transform_0(%arg0: i32, %arg1: i32, %arg2: i32) -> (i32, i32) {
    %c0_i32 = arith.constant 0 : i32
    return %arg0, %arg2 : i32, i32
  }
  func.func @transform_1(%arg0: i32, %arg1: i32, %arg2: i32) -> (i32, i32) {
    %c0_i32 = arith.constant 0 : i32
    return %arg2, %arg1 : i32, i32
  }
  func.func @transform_2(%arg0: i32, %arg1: i32, %arg2: i32) -> (i32, i32) {
    %c0_i32 = arith.constant 0 : i32
    %c0_i32_0 = arith.constant 0 : i32
    return %c0_i32, %arg1 : i32, i32
  }
  func.func @transform_3(%arg0: i32, %arg1: i32, %arg2: i32) -> (i32, i32) {
    %c0_i32 = arith.constant 0 : i32
    return %arg0, %arg1 : i32, i32
  }
}

</mosaic_0001>

<llo_original>
// kernel: tpu_custom_call.1
$region0: #{tpu_custom_call.1}
  #allocation0 [shape = 'u32[]', space=smem, size = 0x4, offset = 0x4, fixed_abs, tag = 'smem constant byte address 0x4 - core index']
  #allocation1 [shape = 'u32[144,128]{1,0:T(1,128)}', space=vmem, size = 0x12000, scoped, tag = 'internal scratch']
  #allocation2 [shape = 'f32[8,128]{1,0:T(8,128)}', space=vmem, size = 0x1000, scoped, tag = 'scratch operand']
  %s0 = inlined_call_operand.hbm [shape: f32[8,128], index: 0, kind: input, shape index: {}]
  %s1 = inlined_call_operand.hbm [shape: f32[128,128], index: 1, kind: input, shape index: {}]
  %s2 = inlined_call_operand.vmem [shape: f32[1,128], index: 2, kind: input, shape index: {}]
  %s3 = inlined_call_operand.hbm [shape: f32[8,128], index: 3, kind: output, shape index: {}]
  %s4 = sld [smem:[#allocation0]]
  $region38: #{tpu_custom_call.1} parent=0
    _
  %s6 = ssub.s32 1, %s4
  %s7 = scalar_select 0, %s6, %s4
  $region1: #{tpu_custom_call.1} parent=0
    #allocation3 [shape = 'u8[4096]{0}', space=vmem, size = 0x1000, scoped, tag = 'input window, operand 0, single buffered']
    #allocation4 [shape = 's32[1]{0}', space=sflag, size = 0x4, scoped, tag = 'scoped memory for tpu_custom_call.1']
    #allocation5 [shape = 's32[1]{0}', space=sflag, size = 0x4, scoped, tag = 'scoped memory for tpu_custom_call.1']
    #allocation6 [shape = 'u8[65536]{0}', space=vmem, size = 0x10000, scoped, tag = 'input window, operand 1, single buffered']
    #allocation7 [shape = 's32[1]{0}', space=sflag, size = 0x4, scoped, tag = 'scoped memory for tpu_custom_call.1']
    #allocation8 [shape = 'u8[4096]{0}', space=vmem, size = 0x1000, scoped, tag = 'output window, operand 0, single buffered']
    %8 = vsyncpa [#allocation4], 0
    %9 = vsyncpa [#allocation7], 0
    %10 = vsyncpa [#allocation5], 0
    // Predicated region
    $region2: #{tpu_custom_call.1} parent=1 // pred_check
      _
    $region3: #{tpu_custom_call.1} parent=1 // pred_check_branch
      %12 = sbr.rel (0) target = $region5
    $region4: #{tpu_custom_call.1} parent=1 // pred_region
      %s14 = ssub.s32 128, 128
      %15 = vsyncadd [#allocation4], %s14
      %s17 = sshll.u32 [#allocation3], 4
      %s18 = int_to_ptr.vmem [resolvable:$true] %s17
      %20 = dma.hbm_to_vmem [thread:$0]  %s0, 128, %s18, [#allocation4]
    $region5: #{tpu_custom_call.1} parent=1 // pred_fallthru
      _
    // Predicated region
    $region6: #{tpu_custom_call.1} parent=1 // pred_check
      _
    $region7: #{tpu_custom_call.1} parent=1 // pred_check_branch
      %22 = sbr.rel (0) target = $region9
    $region8: #{tpu_custom_call.1} parent=1 // pred_region
      %s24 = ssub.s32 2048, 2048
      %25 = vsyncadd [#allocation7], %s24
      %s26 = sshll.u32 [#allocation6], 4
      %s27 = int_to_ptr.vmem [resolvable:$true] %s26
      %32 = dma.hbm_to_vmem [thread:$0]  %s1, 2048, %s27, [#allocation7], 128, 128, 8
    $region9: #{tpu_custom_call.1} parent=1 // pred_fallthru
      _
    // Predicated region
    $region10: #{tpu_custom_call.1} parent=1 // pred_check
      _
    $region11: #{tpu_custom_call.1} parent=1 // pred_check_branch
      %34 = sbr.rel (0) target = $region13
    $region12: #{tpu_custom_call.1} parent=1 // pred_region
      _
    $region13: #{tpu_custom_call.1} parent=1 // pred_fallthru
      _
    // Predicated region
    $region14: #{tpu_custom_call.1} parent=1 // pred_check
      _
    $region15: #{tpu_custom_call.1} parent=1 // pred_check_branch
      %36 = sbr.rel (0) target = $region17
    $region16: #{tpu_custom_call.1} parent=1 // pred_region
      %37 = dma.done [#allocation4], 128
    $region17: #{tpu_custom_call.1} parent=1 // pred_fallthru
      _
    // Predicated region
    $region18: #{tpu_custom_call.1} parent=1 // pred_check
      _
    $region19: #{tpu_custom_call.1} parent=1 // pred_check_branch
      %39 = sbr.rel (0) target = $region21
    $region20: #{tpu_custom_call.1} parent=1 // pred_region
      %40 = dma.done [#allocation7], 2048
    $region21: #{tpu_custom_call.1} parent=1 // pred_fallthru
      _
    %p41 = scmp.eq.s32.totalorder 0, 0
    // Predicated region
    $region22: #{tpu_custom_call.1} parent=1 // pred_check
      %p42 = pneg %p41
    $region23: #{tpu_custom_call.1} parent=1 // pred_check_branch
      %44 = sbr.rel (%p42) target = $region25
    $region24: #{tpu_custom_call.1} parent=1 // pred_region
      %v45 = vld [vmem:[%s2] sm:$0x1]
      %v47 = vlaneseq
      %v48 = vshrl.u32 %v47, 7
      %v49 = vsub.s32 0, %v48
      %v50 = vrot.slane %v45, %v49
      %52 = vst [vmem:[#allocation2] sm:$0xff] %v50
    $region25: #{tpu_custom_call.1} parent=1 // pred_fallthru
      _
    %v53 = vld [vmem:[#allocation2] sm:$0xff]
    %v54 = vld [vmem:[#allocation3] sm:$0xff]
    %v55 = vld [vmem:[#allocation6] sm:$0xff]
    %v56 = vld [vmem:[#allocation6 + $0x8] sm:$0xff]
    %v57 = vld [vmem:[#allocation6 + $0x10] sm:$0xff]
    %v58 = vld [vmem:[#allocation6 + $0x18] sm:$0xff]
    %v59 = vld [vmem:[#allocation6 + $0x20] sm:$0xff]
    %v60 = vld [vmem:[#allocation6 + $0x28] sm:$0xff]
    %v61 = vld [vmem:[#allocation6 + $0x30] sm:$0xff]
    %v62 = vld [vmem:[#allocation6 + $0x38] sm:$0xff]
    %v63 = vld [vmem:[#allocation6 + $0x40] sm:$0xff]
    %v64 = vld [vmem:[#allocation6 + $0x48] sm:$0xff]
    %v65 = vld [vmem:[#allocation6 + $0x50] sm:$0xff]
    %v66 = vld [vmem:[#allocation6 + $0x58] sm:$0xff]
    %v67 = vld [vmem:[#allocation6 + $0x60] sm:$0xff]
    %v68 = vld [vmem:[#allocation6 + $0x68] sm:$0xff]
    %v69 = vld [vmem:[#allocation6 + $0x70] sm:$0xff]
    %v70 = vld [vmem:[#allocation6 + $0x78] sm:$0xff]
    %71 = vmatprep.subr.mxu0 0.0
    %72 = vmatpush1.msra.mxu0 %v55
    %73 = vmatprep.subr.mxu0 0.0
    %74 = vmatpush1.msra.mxu0 %v56
    %75 = vmatprep.subr.mxu0 0.0
    %76 = vmatpush1.msra.mxu0 %v57
    %77 = vmatprep.subr.mxu0 0.0
    %78 = vmatpush1.msra.mxu0 %v58
    %79 = vmatprep.subr.mxu0 0.0
    %80 = vmatpush1.msra.mxu0 %v59
    %81 = vmatprep.subr.mxu0 0.0
    %82 = vmatpush1.msra.mxu0 %v60
    %83 = vmatprep.subr.mxu0 0.0
    %84 = vmatpush1.msra.mxu0 %v61
    %85 = vmatprep.subr.mxu0 0.0
    %86 = vmatpush1.msra.mxu0 %v62
    %87 = vmatprep.subr.mxu0 0.0
    %88 = vmatpush1.msra.mxu0 %v63
    %89 = vmatprep.subr.mxu0 0.0
    %90 = vmatpush1.msra.mxu0 %v64
    %91 = vmatprep.subr.mxu0 0.0
    %92 = vmatpush1.msra.mxu0 %v65
    %93 = vmatprep.subr.mxu0 0.0
    %94 = vmatpush1.msra.mxu0 %v66
    %95 = vmatprep.subr.mxu0 0.0
    %96 = vmatpush1.msra.mxu0 %v67
    %97 = vmatprep.subr.mxu0 0.0
    %98 = vmatpush1.msra.mxu0 %v68
    %99 = vmatprep.subr.mxu0 0.0
    %100 = vmatpush1.msra.mxu0 %v69
    %101 = vmatprep.subr.mxu0 0.0
    %102 = vmatpush1.msra.mxu0 %v70
    %103 = vmatprep.subr.mxu0 0.0
    %104 = vmatpush1.msra.mxu0 0.0
    %105 = vmatprep.subr.mxu0 0.0
    %106 = vmatpush1.msra.mxu0 0.0
    %107 = vmatprep.subr.mxu0 0.0
    %108 = vmatpush1.msra.mxu0 0.0
    %109 = vmatprep.subr.mxu0 0.0
    %110 = vmatpush1.msra.mxu0 0.0
    %111 = vmatprep.subr.mxu0 0.0
    %112 = vmatpush1.msra.mxu0 0.0
    %113 = vmatprep.subr.mxu0 0.0
    %114 = vmatpush1.msra.mxu0 0.0
    %115 = vmatprep.subr.mxu0 0.0
    %116 = vmatpush1.msra.mxu0 0.0
    %117 = vmatprep.subr.mxu0 0.0
    %118 = vmatpush1.msra.mxu0 0.0
    %119 = vmatprep.subr.mxu0 0.0
    %120 = vmatpush1.msra.mxu0 0.0
    %121 = vmatprep.subr.mxu0 0.0
    %122 = vmatpush1.msra.mxu0 0.0
    %123 = vmatprep.subr.mxu0 0.0
    %124 = vmatpush1.msra.mxu0 0.0
    %125 = vmatprep.subr.mxu0 0.0
    %126 = vmatpush1.msra.mxu0 0.0
    %127 = vmatprep.subr.mxu0 0.0
    %128 = vmatpush1.msra.mxu0 0.0
    %129 = vmatprep.subr.mxu0 0.0
    %130 = vmatpush1.msra.mxu0 0.0
    %131 = vmatprep.subr.mxu0 0.0
    %132 = vmatpush1.msra.mxu0 0.0
    %133 = vmatprep.subr.mxu0 0.0
    %134 = vmatpush1.msra.mxu0 0.0
    %135 = vmatprep.mubr.f32.mxu0 0.0
    %136 = vmatmul.mubr.f32.gmra.mrb[0].mxu0 %v54
    %v137 = vpop.f32.mrb[0].mxu0
    %v138 = vadd.f32 0.0, %v137
    %v139 = vpop.f32.mrb[0].mxu0
    %140 = vdwg.mxu0
    %v141 = vadd.f32 %v53, %v138
    %142 = vst [vmem:[#allocation2] sm:$0xff] %v141
    // Predicated region
    $region26: #{tpu_custom_call.1} parent=1 // pred_check
      %p143 = pneg %p41
    $region27: #{tpu_custom_call.1} parent=1 // pred_check_branch
      %145 = sbr.rel (%p143) target = $region29
    $region28: #{tpu_custom_call.1} parent=1 // pred_region
      %v146 = vld [vmem:[#allocation2] sm:$0xff]
      %147 = vst [vmem:[#allocation8] sm:$0xff] %v146
    $region29: #{tpu_custom_call.1} parent=1 // pred_fallthru
      _
    // Predicated region
    $region30: #{tpu_custom_call.1} parent=1 // pred_check
      _
    $region31: #{tpu_custom_call.1} parent=1 // pred_check_branch
      %149 = sbr.rel (0) target = $region33
    $region32: #{tpu_custom_call.1} parent=1 // pred_region
      %s151 = ssub.s32 128, 128
      %152 = vsyncadd [#allocation5], %s151
      %s154 = sshll.u32 [#allocation8], 4
      %s155 = int_to_ptr.vmem [resolvable:$true] %s154
      %157 = dma.vmem_to_hbm [thread:$0]  %s155, 128, %s3, [#allocation5]
    $region33: #{tpu_custom_call.1} parent=1 // pred_fallthru
      _
    // Predicated region
    $region34: #{tpu_custom_call.1} parent=1 // pred_check
      _
    $region35: #{tpu_custom_call.1} parent=1 // pred_check_branch
      %159 = sbr.rel (0) target = $region37
    $region36: #{tpu_custom_call.1} parent=1 // pred_region
      %160 = dma.done [#allocation5], 128
    $region37: #{tpu_custom_call.1} parent=1 // pred_fallthru
      _
    %161 = vsyncpa [#allocation4], 1
    %162 = vsyncpa [#allocation7], 1
    %163 = vsyncpa [#allocation5], 1

</llo_original>
